<compile_context>
chip_gen: v7x
topology: tpu7x:2x2x1
jax: 0.10.0
libtpu: 0.0.40
codegen_flags: <defaults>
</compile_context>

<pallas_src>
import jax
import jax.numpy as jnp
from jax.experimental import pallas as pl
from jax.experimental.pallas import tpu as pltpu

_H = 128          # padded hidden width: one full lane tile
_SUBLANE = 8      # f32 sublane granularity for the batch (row) axis
_MAX_TILE = 8192  # upper bound on rows per grid step


def _round_up(n, m):
    return ((n + m - 1) // m) * m


def _pad2d(a, rows, cols):
    pr, pc = rows - a.shape[0], cols - a.shape[1]
    if pr == 0 and pc == 0:
        return a
    return jnp.pad(a, ((0, pr), (0, pc)))


def _autoencoder_kernel(x_ref, w_in_ref, w_mid_ref, w_out_ref,
                        b_enc_ref, b_out_ref, out_ref):
    """Fused 6-layer encoder/decoder MLP for one (batch_tile, :) row tile.

    x is loaded at its native (unpadded, f32) width and cast to bf16 in-kernel;
    every matmul uses bf16 MXU operands with f32 accumulation, and bias + ReLU
    run in f32.  Zero-padded hidden lanes stay exactly zero (zero weights/bias,
    ReLU(0)=0), so padding is mathematically inert.  The final layer is stored
    straight to the output dtype (no extra bf16 round-trip, no wrapper slice).
    """
    f32 = jnp.float32
    bf16 = jnp.bfloat16

    def layer(h, w, b, relu, keep_f32=False):
        y = jnp.dot(h, w, preferred_element_type=f32) + b
        if relu:
            y = jnp.maximum(y, 0.0)
        return y if keep_f32 else y.astype(bf16)

    h = x_ref[...].astype(bf16)                                            # (bt, d_in)
    # Encoder: Linear -> ReLU -> Linear -> ReLU -> Linear
    h = layer(h, w_in_ref[...],               b_enc_ref[:, 0 * _H:1 * _H], True)
    h = layer(h, w_mid_ref[:, 0 * _H:1 * _H], b_enc_ref[:, 1 * _H:2 * _H], True)
    h = layer(h, w_mid_ref[:, 1 * _H:2 * _H], b_enc_ref[:, 2 * _H:3 * _H], False)
    # Decoder: Linear -> ReLU -> Linear -> ReLU -> Linear
    h = layer(h, w_mid_ref[:, 2 * _H:3 * _H], b_enc_ref[:, 3 * _H:4 * _H], True)
    h = layer(h, w_mid_ref[:, 3 * _H:4 * _H], b_enc_ref[:, 4 * _H:5 * _H], True)
    y = layer(h, w_out_ref[...],              b_out_ref[...], False, keep_f32=True)
    out_ref[...] = y.astype(out_ref.dtype)


def _vmem_capacity_bytes():
    """Generation-aware VMEM capacity (64 MiB/TC on v7x, 128 MiB on v5e/v6e)."""
    try:
        return int(pltpu.get_tpu_info().vmem_capacity_bytes)
    except Exception:
        return 64 * 1024 * 1024  # conservative (v7x per-TensorCore)


def _pick_batch_tile(batch, d_in, d_out, act_budget):
    # VMEM bytes per batch row: double-buffered f32 in/out pipeline blocks plus
    # live in-kernel intermediates (bf16 h + f32 accumulator, both _H wide).
    per_row = 2 * 4 * (d_in + d_out) + _H * (2 + 4 + 4)
    tile = max(_SUBLANE, min(_MAX_TILE, act_budget // per_row))
    tile = min(tile, _round_up(batch, _SUBLANE))
    tile = max(_SUBLANE, (tile // _SUBLANE) * _SUBLANE)
    steps = pl.cdiv(batch, tile)
    if steps > 1 and steps % 2:
        # Prefer an even number of grid steps so the "parallel" batch axis can
        # shard across v7x's two TensorCores.
        tile = max(_SUBLANE, _round_up(pl.cdiv(batch, steps + 1), _SUBLANE))
    return tile


def autoencoder_forward(x, params, *, batch_tile=None, lane_dense_output=False):
    """Fused autoencoder forward.

    x: (batch, input_dim) float32.  params: list of 6 (W, b) pairs with W shaped
    (fan_in, fan_out) (i.e. nn.Linear.weight.T) and b shaped (fan_out,).

    lane_dense_output=True stores a zero-padded 128-lane output and slices it
    afterwards -- preferable on v5e (single store slot; sub-128 stores are
    masked vst).  Default False writes the output at its native width.
    """
    batch, input_dim = x.shape
    assert len(params) == 6
    bf16, f32 = jnp.bfloat16, jnp.float32
    d_in = input_dim
    d_out = _H if lane_dense_output else input_dim

    # ---- parameter packing: 5 tensors instead of 12 (fewer DMA descriptors),
    # all with a constant index_map so they stay VMEM-resident across steps.
    w_in = _pad2d(params[0][0].astype(bf16), d_in, _H)                     # (d_in, 128)
    w_mid = jnp.concatenate(
        [_pad2d(params[i][0].astype(bf16), _H, _H) for i in (1, 2, 3, 4)],
        axis=1)                                                            # (128, 512)
    w_out = _pad2d(params[5][0].astype(bf16), _H, d_out)                   # (128, d_out)
    b_enc = jnp.concatenate(
        [_pad2d(params[i][1].reshape(1, -1).astype(f32), 1, _H) for i in range(5)],
        axis=1)                                                            # (1, 640)
    b_out = _pad2d(params[5][1].reshape(1, -1).astype(f32), 1, d_out)      # (1, d_out)
    param_arrays = (w_in, w_mid, w_out, b_enc, b_out)
    param_bytes = sum(int(p.size) * p.dtype.itemsize for p in param_arrays)

    # ---- generation-aware tiling / VMEM budget.
    vmem_cap = _vmem_capacity_bytes()
    act_budget = max(4 << 20, min(vmem_cap // 3, 32 << 20) - 2 * param_bytes)
    if batch_tile is None:
        batch_tile = _pick_batch_tile(batch, d_in, d_out, act_budget)
    batch_tile = max(_SUBLANE, (int(batch_tile) // _SUBLANE) * _SUBLANE)
    grid = (pl.cdiv(batch, batch_tile),)   # partial last block handled by Pallas

    footprint = (2 * 4 * batch_tile * (d_in + d_out)          # dbl-buffered in/out
                 + batch_tile * _H * (2 + 4 + 4)              # live intermediates
                 + 2 * param_bytes)
    vmem_limit = int(min(max(32 << 20, 3 * footprint // 2), (3 * vmem_cap) // 4))

    act_in_spec = pl.BlockSpec((batch_tile, d_in), lambda i: (i, 0))
    act_out_spec = pl.BlockSpec((batch_tile, d_out), lambda i: (i, 0))
    param_specs = [pl.BlockSpec(p.shape, lambda i: (0, 0)) for p in param_arrays]

    flops = 2 * batch * (d_in * _H + 4 * _H * _H + _H * d_out)
    bytes_accessed = (batch * (d_in + d_out) * x.dtype.itemsize + param_bytes)

    out = pl.pallas_call(
        _autoencoder_kernel,
        out_shape=jax.ShapeDtypeStruct((batch, d_out), x.dtype),
        grid_spec=pltpu.PrefetchScalarGridSpec(
            num_scalar_prefetch=0,
            grid=grid,
            in_specs=[act_in_spec] + param_specs,
            out_specs=act_out_spec,
        ),
        compiler_params=pltpu.CompilerParams(
            dimension_semantics=("parallel",),
            vmem_limit_bytes=vmem_limit,
        ),
        cost_estimate=pl.CostEstimate(
            flops=flops, transcendentals=0, bytes_accessed=bytes_accessed),
    )(x, *param_arrays)

    if lane_dense_output:
        out = out[:, :input_dim]
    return out


def init_params(key, input_dim):
    """Deterministic init matching nn.Linear's U(-1/sqrt(fan_in), 1/sqrt(fan_in))."""
    dims = [(input_dim, 64), (64, 32), (32, 16), (16, 32), (32, 64), (64, input_dim)]
    params = []
    for fan_in, fan_out in dims:
        key, kw, kb = jax.random.split(key, 3)
        bound = 1.0 / (fan_in ** 0.5)
        w = jax.random.uniform(kw, (fan_in, fan_out), jnp.float32, -bound, bound)
        b = jax.random.uniform(kb, (fan_out,), jnp.float32, -bound, bound)
        params.append((w, b))
    return params


def reference_forward(x, params):
    """Plain-JAX reference mirroring the kernel's bf16-operand / f32-accumulate math."""
    relu_after = (True, True, False, True, True, False)
    h = x.astype(jnp.bfloat16)
    for li, ((w, b), relu) in enumerate(zip(params, relu_after)):
        y = jnp.dot(h, w.astype(jnp.bfloat16), preferred_element_type=jnp.float32)
        y = y + b.astype(jnp.float32)
        if relu:
            y = jnp.maximum(y, 0.0)
        h = y if li == len(params) - 1 else y.astype(jnp.bfloat16)
    return h.astype(x.dtype)


if __name__ == "__main__":
    input_dim = 32
    batch = 8

    key = jax.random.PRNGKey(0)
    key, kx, kx2 = jax.random.split(key, 3)
    x = jax.random.normal(kx, (batch, input_dim), jnp.float32)
    params = init_params(key, input_dim)
    ref = reference_forward(x, params)

    # default path: narrow (input_dim-wide) f32 output, no wrapper pad/slice
    out = jax.block_until_ready(autoencoder_forward(x, params))
    assert out.shape == (batch, input_dim)
    assert out.dtype == x.dtype
    assert jnp.allclose(out, ref, atol=2e-2, rtol=2e-2), "mismatch (default path)"

    # v5e-friendly lane-dense output path
    out_ld = jax.block_until_ready(autoencoder_forward(x, params, lane_dense_output=True))
    assert jnp.allclose(out_ld, ref, atol=2e-2, rtol=2e-2), "mismatch (lane-dense path)"

    # multi-step grid with a partial last block (exercises the pipelined path)
    x2 = jax.random.normal(kx2, (300, input_dim), jnp.float32)
    out2 = jax.block_until_ready(autoencoder_forward(x2, params, batch_tile=128))
    ref2 = reference_forward(x2, params)
    assert jnp.allclose(out2, ref2, atol=2e-2, rtol=2e-2), "mismatch (multi-step path)"

    print("KERNEL_OK")
</pallas_src>

<mosaic_0001>
module attributes {stable_mosaic.version = 11 : i64} {
  func.func @_autoencoder_kernel(%arg0: i32, %arg1: memref<8x32xf32, #tpu.memory_space<vmem>>, %arg2: memref<32x128xbf16, #tpu.memory_space<vmem>>, %arg3: memref<128x512xbf16, #tpu.memory_space<vmem>>, %arg4: memref<128x32xbf16, #tpu.memory_space<vmem>>, %arg5: memref<1x640xf32, #tpu.memory_space<vmem>>, %arg6: memref<1x32xf32, #tpu.memory_space<vmem>>, %arg7: memref<8x32xf32, #tpu.memory_space<vmem>>) attributes {dimension_semantics = [#tpu.dimension_semantics<parallel>], iteration_bounds = array<i64: 1>, scalar_prefetch = 0 : i64, scratch_operands = 0 : i64, tpu.core_type = #tpu.core_type<tc>, window_params = [{transform_indices = @transform_0, window_bounds = array<i64: 8, 32>}, {pipeline_mode = #tpu.pipeline_mode<synchronous>, transform_indices = @transform_1, window_bounds = array<i64: 32, 128>}, {pipeline_mode = #tpu.pipeline_mode<synchronous>, transform_indices = @transform_2, window_bounds = array<i64: 128, 512>}, {pipeline_mode = #tpu.pipeline_mode<synchronous>, transform_indices = @transform_3, window_bounds = array<i64: 128, 32>}, {pipeline_mode = #tpu.pipeline_mode<synchronous>, transform_indices = @transform_4, window_bounds = array<i64: 1, 640>}, {pipeline_mode = #tpu.pipeline_mode<synchronous>, transform_indices = @transform_5, window_bounds = array<i64: 1, 32>}, {transform_indices = @transform_6, window_bounds = array<i64: 8, 32>}]} {
    %c0 = arith.constant 0 : index
    %c0_0 = arith.constant 0 : index
    %0 = vector.load %arg1[%c0, %c0_0] : memref<8x32xf32, #tpu.memory_space<vmem>>, vector<8x32xf32>
    %1 = arith.truncf %0 : vector<8x32xf32> to vector<8x32xbf16>
    %c0_1 = arith.constant 0 : index
    %c0_2 = arith.constant 0 : index
    %2 = vector.load %arg2[%c0_1, %c0_2] : memref<32x128xbf16, #tpu.memory_space<vmem>>, vector<32x128xbf16>
    %c0_3 = arith.constant 0 : index
    %c0_4 = arith.constant 0 : index
    %3 = vector.load %arg5[%c0_3, %c0_4] : memref<1x640xf32, #tpu.memory_space<vmem>>, vector<1x128xf32>
    %cst = arith.constant dense<0.000000e+00> : vector<8x128xf32>
    %4 = tpu.matmul %1, %2, %cst {dimension_numbers = #tpu.dot_dimension_numbers<[1], [0], [0], [1], [0, 0, 1, 1], [], []>} : vector<8x32xbf16>, vector<32x128xbf16>, vector<8x128xf32> -> vector<8x128xf32>
    %5 = vector.broadcast %3 : vector<1x128xf32> to vector<8x128xf32>
    %6 = arith.addf %4, %5 : vector<8x128xf32>
    %cst_5 = arith.constant 0.000000e+00 : f32
    %7 = vector.broadcast %cst_5 : f32 to vector<8x128xf32>
    %8 = arith.maximumf %6, %7 : vector<8x128xf32>
    %9 = arith.truncf %8 : vector<8x128xf32> to vector<8x128xbf16>
    %c0_6 = arith.constant 0 : index
    %c0_7 = arith.constant 0 : index
    %10 = vector.load %arg3[%c0_6, %c0_7] : memref<128x512xbf16, #tpu.memory_space<vmem>>, vector<128x128xbf16>
    %c0_8 = arith.constant 0 : index
    %c128 = arith.constant 128 : index
    %11 = vector.load %arg5[%c0_8, %c128] : memref<1x640xf32, #tpu.memory_space<vmem>>, vector<1x128xf32>
    %cst_9 = arith.constant dense<0.000000e+00> : vector<8x128xf32>
    %12 = tpu.matmul %9, %10, %cst_9 {dimension_numbers = #tpu.dot_dimension_numbers<[1], [0], [0], [1], [0, 0, 1, 1], [], []>} : vector<8x128xbf16>, vector<128x128xbf16>, vector<8x128xf32> -> vector<8x128xf32>
    %13 = vector.broadcast %11 : vector<1x128xf32> to vector<8x128xf32>
    %14 = arith.addf %12, %13 : vector<8x128xf32>
    %cst_10 = arith.constant 0.000000e+00 : f32
    %15 = vector.broadcast %cst_10 : f32 to vector<8x128xf32>
    %16 = arith.maximumf %14, %15 : vector<8x128xf32>
    %17 = arith.truncf %16 : vector<8x128xf32> to vector<8x128xbf16>
    %c0_11 = arith.constant 0 : index
    %c128_12 = arith.constant 128 : index
    %18 = vector.load %arg3[%c0_11, %c128_12] : memref<128x512xbf16, #tpu.memory_space<vmem>>, vector<128x128xbf16>
    %c0_13 = arith.constant 0 : index
    %c256 = arith.constant 256 : index
    %19 = vector.load %arg5[%c0_13, %c256] : memref<1x640xf32, #tpu.memory_space<vmem>>, vector<1x128xf32>
    %cst_14 = arith.constant dense<0.000000e+00> : vector<8x128xf32>
    %20 = tpu.matmul %17, %18, %cst_14 {dimension_numbers = #tpu.dot_dimension_numbers<[1], [0], [0], [1], [0, 0, 1, 1], [], []>} : vector<8x128xbf16>, vector<128x128xbf16>, vector<8x128xf32> -> vector<8x128xf32>
    %21 = vector.broadcast %19 : vector<1x128xf32> to vector<8x128xf32>
    %22 = arith.addf %20, %21 : vector<8x128xf32>
    %23 = arith.truncf %22 : vector<8x128xf32> to vector<8x128xbf16>
    %c0_15 = arith.constant 0 : index
    %c256_16 = arith.constant 256 : index
    %24 = vector.load %arg3[%c0_15, %c256_16] : memref<128x512xbf16, #tpu.memory_space<vmem>>, vector<128x128xbf16>
    %c0_17 = arith.constant 0 : index
    %c384 = arith.constant 384 : index
    %25 = vector.load %arg5[%c0_17, %c384] : memref<1x640xf32, #tpu.memory_space<vmem>>, vector<1x128xf32>
    %cst_18 = arith.constant dense<0.000000e+00> : vector<8x128xf32>
    %26 = tpu.matmul %23, %24, %cst_18 {dimension_numbers = #tpu.dot_dimension_numbers<[1], [0], [0], [1], [0, 0, 1, 1], [], []>} : vector<8x128xbf16>, vector<128x128xbf16>, vector<8x128xf32> -> vector<8x128xf32>
    %27 = vector.broadcast %25 : vector<1x128xf32> to vector<8x128xf32>
    %28 = arith.addf %26, %27 : vector<8x128xf32>
    %cst_19 = arith.constant 0.000000e+00 : f32
    %29 = vector.broadcast %cst_19 : f32 to vector<8x128xf32>
    %30 = arith.maximumf %28, %29 : vector<8x128xf32>
    %31 = arith.truncf %30 : vector<8x128xf32> to vector<8x128xbf16>
    %c0_20 = arith.constant 0 : index
    %c384_21 = arith.constant 384 : index
    %32 = vector.load %arg3[%c0_20, %c384_21] : memref<128x512xbf16, #tpu.memory_space<vmem>>, vector<128x128xbf16>
    %c0_22 = arith.constant 0 : index
    %c512 = arith.constant 512 : index
    %33 = vector.load %arg5[%c0_22, %c512] : memref<1x640xf32, #tpu.memory_space<vmem>>, vector<1x128xf32>
    %cst_23 = arith.constant dense<0.000000e+00> : vector<8x128xf32>
    %34 = tpu.matmul %31, %32, %cst_23 {dimension_numbers = #tpu.dot_dimension_numbers<[1], [0], [0], [1], [0, 0, 1, 1], [], []>} : vector<8x128xbf16>, vector<128x128xbf16>, vector<8x128xf32> -> vector<8x128xf32>
    %35 = vector.broadcast %33 : vector<1x128xf32> to vector<8x128xf32>
    %36 = arith.addf %34, %35 : vector<8x128xf32>
    %cst_24 = arith.constant 0.000000e+00 : f32
    %37 = vector.broadcast %cst_24 : f32 to vector<8x128xf32>
    %38 = arith.maximumf %36, %37 : vector<8x128xf32>
    %39 = arith.truncf %38 : vector<8x128xf32> to vector<8x128xbf16>
    %c0_25 = arith.constant 0 : index
    %c0_26 = arith.constant 0 : index
    %40 = vector.load %arg4[%c0_25, %c0_26] : memref<128x32xbf16, #tpu.memory_space<vmem>>, vector<128x32xbf16>
    %c0_27 = arith.constant 0 : index
    %c0_28 = arith.constant 0 : index
    %41 = vector.load %arg6[%c0_27, %c0_28] : memref<1x32xf32, #tpu.memory_space<vmem>>, vector<1x32xf32>
    %cst_29 = arith.constant dense<0.000000e+00> : vector<8x32xf32>
    %42 = tpu.matmul %39, %40, %cst_29 {dimension_numbers = #tpu.dot_dimension_numbers<[1], [0], [0], [1], [0, 0, 1, 1], [], []>} : vector<8x128xbf16>, vector<128x32xbf16>, vector<8x32xf32> -> vector<8x32xf32>
    %43 = vector.broadcast %41 : vector<1x32xf32> to vector<8x32xf32>
    %44 = arith.addf %42, %43 : vector<8x32xf32>
    %c0_30 = arith.constant 0 : index
    %c0_31 = arith.constant 0 : index
    %45 = vector.load %arg7[%c0_30, %c0_31] : memref<8x32xf32, #tpu.memory_space<vmem>>, vector<8x32xf32>
    tpu.vector_store %arg7[%c0_30, %c0_31], %44 {strides = array<i32>} : memref<8x32xf32, #tpu.memory_space<vmem>>, vector<8x32xf32>,
    return
  }
  func.func @transform_0(%arg0: i32) -> (i32, i32) {
    %c0_i32 = arith.constant 0 : i32
    %c0_i32_0 = arith.constant 0 : i32
    return %arg0, %c0_i32 : i32, i32
  }
  func.func @transform_1(%arg0: i32) -> (i32, i32) {
    %c0_i32 = arith.constant 0 : i32
    %c0_i32_0 = arith.constant 0 : i32
    %c0_i32_1 = arith.constant 0 : i32
    return %c0_i32, %c0_i32_0 : i32, i32
  }
  func.func @transform_2(%arg0: i32) -> (i32, i32) {
    %c0_i32 = arith.constant 0 : i32
    %c0_i32_0 = arith.constant 0 : i32
    %c0_i32_1 = arith.constant 0 : i32
    return %c0_i32, %c0_i32_0 : i32, i32
  }
  func.func @transform_3(%arg0: i32) -> (i32, i32) {
    %c0_i32 = arith.constant 0 : i32
    %c0_i32_0 = arith.constant 0 : i32
    %c0_i32_1 = arith.constant 0 : i32
    return %c0_i32, %c0_i32_0 : i32, i32
  }
  func.func @transform_4(%arg0: i32) -> (i32, i32) {
    %c0_i32 = arith.constant 0 : i32
    %c0_i32_0 = arith.constant 0 : i32
    %c0_i32_1 = arith.constant 0 : i32
    return %c0_i32, %c0_i32_0 : i32, i32
  }
  func.func @transform_5(%arg0: i32) -> (i32, i32) {
    %c0_i32 = arith.constant 0 : i32
    %c0_i32_0 = arith.constant 0 : i32
    %c0_i32_1 = arith.constant 0 : i32
    return %c0_i32, %c0_i32_0 : i32, i32
  }
  func.func @transform_6(%arg0: i32) -> (i32, i32) {
    %c0_i32 = arith.constant 0 : i32
    %c0_i32_0 = arith.constant 0 : i32
    return %arg0, %c0_i32 : i32, i32
  }
}

</mosaic_0001>

<llo_original>
// kernel: tpu_custom_call.1
$region0: #{tpu_custom_call.1}
  #allocation0 [shape = 'u32[]', space=smem, size = 0x4, offset = 0x4, fixed_abs, tag = 'smem constant byte address 0x4 - core index']
  #allocation1 [shape = 'u32[144,128]{1,0:T(1,128)}', space=vmem, size = 0x12000, scoped, tag = 'internal scratch']
  %s0 = inlined_call_operand.vmem [shape: f32[8,32], index: 0, kind: input, shape index: {}]
  %s1 = inlined_call_operand.vmem [shape: bf16[32,128], index: 1, kind: input, shape index: {}]
  %s2 = inlined_call_operand.hbm [shape: bf16[128,512], index: 2, kind: input, shape index: {}]
  %s3 = inlined_call_operand.vmem [shape: bf16[128,32], index: 3, kind: input, shape index: {}]
  %s4 = inlined_call_operand.vmem [shape: f32[1,640], index: 4, kind: input, shape index: {}]
  %s5 = inlined_call_operand.vmem [shape: f32[1,32], index: 5, kind: input, shape index: {}]
  %s6 = inlined_call_operand.hbm [shape: f32[8,32], index: 6, kind: output, shape index: {}]
  %s7 = sld [smem:[#allocation0]]
  $region38: #{tpu_custom_call.1} parent=0
    _
  %s9 = ssub.s32 1, %s7
  %s10 = scalar_select 0, %s9, %s7
  $region1: #{tpu_custom_call.1} parent=0
    #allocation2 [shape = 'u8[131072]{0}', space=vmem, size = 0x20000, scoped, tag = 'input window, operand 2, single buffered']
    #allocation3 [shape = 's32[1]{0}', space=sflag, size = 0x4, scoped, tag = 'scoped memory for tpu_custom_call.1']
    #allocation4 [shape = 's32[1]{0}', space=sflag, size = 0x4, scoped, tag = 'scoped memory for tpu_custom_call.1']
    #allocation5 [shape = 'u8[4096]{0}', space=vmem, size = 0x1000, scoped, tag = 'output window, operand 0, single buffered']
    %11 = vsyncpa [#allocation3], 0
    %12 = vsyncpa [#allocation4], 0
    // Predicated region
    $region2: #{tpu_custom_call.1} parent=1 // pred_check
      _
    $region3: #{tpu_custom_call.1} parent=1 // pred_check_branch
      %14 = sbr.rel (0) target = $region5
    $region4: #{tpu_custom_call.1} parent=1 // pred_region
      _
    $region5: #{tpu_custom_call.1} parent=1 // pred_fallthru
      _
    // Predicated region
    $region6: #{tpu_custom_call.1} parent=1 // pred_check
      _
    $region7: #{tpu_custom_call.1} parent=1 // pred_check_branch
      %16 = sbr.rel (0) target = $region9
    $region8: #{tpu_custom_call.1} parent=1 // pred_region
      _
    $region9: #{tpu_custom_call.1} parent=1 // pred_fallthru
      _
    // Predicated region
    $region10: #{tpu_custom_call.1} parent=1 // pred_check
      _
    $region11: #{tpu_custom_call.1} parent=1 // pred_check_branch
      %18 = sbr.rel (0) target = $region13
    $region12: #{tpu_custom_call.1} parent=1 // pred_region
      %s20 = ssub.s32 4096, 4096
      %21 = vsyncadd [#allocation3], %s20
      %s22 = sshll.u32 [#allocation2], 4
      %s23 = int_to_ptr.vmem [resolvable:$true] %s22
      %28 = dma.hbm_to_vmem [thread:$0]  %s2, 4096, %s23, [#allocation3], 256, 256, 16
    $region13: #{tpu_custom_call.1} parent=1 // pred_fallthru
      _
    // Predicated region
    $region14: #{tpu_custom_call.1} parent=1 // pred_check
      _
    $region15: #{tpu_custom_call.1} parent=1 // pred_check_branch
      %30 = sbr.rel (0) target = $region17
    $region16: #{tpu_custom_call.1} parent=1 // pred_region
      _
    $region17: #{tpu_custom_call.1} parent=1 // pred_fallthru
      _
    // Predicated region
    $region18: #{tpu_custom_call.1} parent=1 // pred_check
      _
    $region19: #{tpu_custom_call.1} parent=1 // pred_check_branch
      %32 = sbr.rel (0) target = $region21
    $region20: #{tpu_custom_call.1} parent=1 // pred_region
      _
    $region21: #{tpu_custom_call.1} parent=1 // pred_fallthru
      _
    // Predicated region
    $region22: #{tpu_custom_call.1} parent=1 // pred_check
      _
    $region23: #{tpu_custom_call.1} parent=1 // pred_check_branch
      %34 = sbr.rel (0) target = $region25
    $region24: #{tpu_custom_call.1} parent=1 // pred_region
      _
    $region25: #{tpu_custom_call.1} parent=1 // pred_fallthru
      _
    // Predicated region
    $region26: #{tpu_custom_call.1} parent=1 // pred_check
      _
    $region27: #{tpu_custom_call.1} parent=1 // pred_check_branch
      %36 = sbr.rel (0) target = $region29
    $region28: #{tpu_custom_call.1} parent=1 // pred_region
      %37 = dma.done [#allocation3], 4096
    $region29: #{tpu_custom_call.1} parent=1 // pred_fallthru
      _
    %v39 = vld [vmem:[%s0] sm:$0xff]
    %v40 = vpack.c.bf16 %v39, %v39
    %v41 = vld [vmem:[%s1] sm:$0xf]
    %v42 = vld [vmem:[%s1 + $0x4] sm:$0xf]
    %v43 = vld [vmem:[%s1 + $0x8] sm:$0xf]
    %v44 = vld [vmem:[%s1 + $0xc] sm:$0xf]
    %v45 = vld [vmem:[%s4] sm:$0x1]
    %v47 = vlaneseq
    %v48 = vshrl.u32 %v47, 7
    %v49 = vsub.s32 0, %v48
    %v50 = vrot.slane %v45, %v49
    %v56 = vunpack.c.l.b16 %v41
    %v57 = vunpack.c.l.b16 %v42
    %v58 = vunpack.c.l.b16 %v43
    %v59 = vunpack.c.l.b16 %v44
    %v60 = vpack.c.b16 %v57, %v56
    %v61 = vpack.c.b16 %v59, %v58
    %vm64 = vcmask 261120
    %v66 = vsel %vm64, %v40, 0
    %68 = vmatprep.subr.bf16.mxu0 0
    %69 = vmatpush1.bf16.msra.mxu0 %v60
    %70 = vmatprep.subr.bf16.mxu0 0
    %71 = vmatpush1.bf16.msra.mxu0 %v61
    %72 = vmatprep.subr.bf16.mxu0 0
    %73 = vmatpush1.bf16.msra.mxu0 0
    %74 = vmatprep.subr.bf16.mxu0 0
    %75 = vmatpush1.bf16.msra.mxu0 0
    %76 = vmatprep.subr.bf16.mxu0 0
    %77 = vmatpush1.bf16.msra.mxu0 0
    %78 = vmatprep.subr.bf16.mxu0 0
    %79 = vmatpush1.bf16.msra.mxu0 0
    %80 = vmatprep.subr.bf16.mxu0 0
    %81 = vmatpush1.bf16.msra.mxu0 0
    %82 = vmatprep.subr.bf16.mxu0 0
    %83 = vmatpush1.bf16.msra.mxu0 0
    %84 = vmatprep.subr.bf16.mxu0 0
    %85 = vmatpush1.bf16.msra.mxu0 0
    %86 = vmatprep.subr.bf16.mxu0 0
    %87 = vmatpush1.bf16.msra.mxu0 0
    %88 = vmatprep.subr.bf16.mxu0 0
    %89 = vmatpush1.bf16.msra.mxu0 0
    %90 = vmatprep.subr.bf16.mxu0 0
    %91 = vmatpush1.bf16.msra.mxu0 0
    %92 = vmatprep.subr.bf16.mxu0 0
    %93 = vmatpush1.bf16.msra.mxu0 0
    %94 = vmatprep.subr.bf16.mxu0 0
    %95 = vmatpush1.bf16.msra.mxu0 0
    %96 = vmatprep.subr.bf16.mxu0 0
    %97 = vmatpush1.bf16.msra.mxu0 0
    %98 = vmatprep.subr.bf16.mxu0 0
    %99 = vmatpush1.bf16.msra.mxu0 0
    %100 = vmatprep.mubr.bf16.mxu0 0
    %101 = vmatmul.mubr.bf16.gmra.mrb[0].mxu0 %v66
    %v102 = vpop.f32.mrb[0].mxu0
    %v103 = vadd.f32 %v50, %v102
    %v104 = vpop.f32.mrb[0].mxu0
    %v105 = vpop.f32.mrb[0].mxu0
    %v106 = vpop.f32.mrb[0].mxu0
    %107 = vdwg.mxu0
    %v108 = vmax.f32 %v103, 0.0
    %v109 = vpack.c.bf16 %v108, %v108
    %v110 = vld [vmem:[#allocation2] sm:$0xf]
    %v111 = vld [vmem:[#allocation2 + $0x10] sm:$0xf]
    %v112 = vld [vmem:[#allocation2 + $0x20] sm:$0xf]
    %v113 = vld [vmem:[#allocation2 + $0x30] sm:$0xf]
    %v114 = vld [vmem:[#allocation2 + $0x40] sm:$0xf]
    %v115 = vld [vmem:[#allocation2 + $0x50] sm:$0xf]
    %v116 = vld [vmem:[#allocation2 + $0x60] sm:$0xf]
    %v117 = vld [vmem:[#allocation2 + $0x70] sm:$0xf]
    %v118 = vld [vmem:[#allocation2 + $0x80] sm:$0xf]
    %v119 = vld [vmem:[#allocation2 + $0x90] sm:$0xf]
    %v120 = vld [vmem:[#allocation2 + $0xa0] sm:$0xf]
    %v121 = vld [vmem:[#allocation2 + $0xb0] sm:$0xf]
    %v122 = vld [vmem:[#allocation2 + $0xc0] sm:$0xf]
    %v123 = vld [vmem:[#allocation2 + $0xd0] sm:$0xf]
    %v124 = vld [vmem:[#allocation2 + $0xe0] sm:$0xf]
    %v125 = vld [vmem:[#allocation2 + $0xf0] sm:$0xf]
    %v126 = vld [vmem:[%s4 + $0x1] sm:$0x1]
    %v128 = vlaneseq
    %v129 = vshrl.u32 %v128, 7
    %v130 = vsub.s32 0, %v129
    %v131 = vrot.slane %v126, %v130
    %v149 = vunpack.c.l.b16 %v110
    %v150 = vunpack.c.l.b16 %v111
    %v151 = vunpack.c.l.b16 %v112
    %v152 = vunpack.c.l.b16 %v113
    %v153 = vunpack.c.l.b16 %v114
    %v154 = vunpack.c.l.b16 %v115
    %v155 = vunpack.c.l.b16 %v116
    %v156 = vunpack.c.l.b16 %v117
    %v157 = vunpack.c.l.b16 %v118
    %v158 = vunpack.c.l.b16 %v119
    %v159 = vunpack.c.l.b16 %v120
    %v160 = vunpack.c.l.b16 %v121
    %v161 = vunpack.c.l.b16 %v122
    %v162 = vunpack.c.l.b16 %v123
    %v163 = vunpack.c.l.b16 %v124
    %v164 = vunpack.c.l.b16 %v125
    %v165 = vpack.c.b16 %v150, %v149
    %v166 = vpack.c.b16 %v152, %v151
    %v167 = vpack.c.b16 %v154, %v153
    %v168 = vpack.c.b16 %v156, %v155
    %v169 = vpack.c.b16 %v158, %v157
    %v170 = vpack.c.b16 %v160, %v159
    %v171 = vpack.c.b16 %v162, %v161
    %v172 = vpack.c.b16 %v164, %v163
    %181 = vmatprep.subr.bf16.mxu0 0
    %182 = vmatpush1.bf16.msra.mxu0 %v165
    %183 = vmatprep.subr.bf16.mxu0 0
    %184 = vmatpush1.bf16.msra.mxu0 %v166
    %185 = vmatprep.subr.bf16.mxu0 0
    %186 = vmatpush1.bf16.msra.mxu0 %v167
    %187 = vmatprep.subr.bf16.mxu0 0
    %188 = vmatpush1.bf16.msra.mxu0 %v168
    %189 = vmatprep.subr.bf16.mxu0 0
    %190 = vmatpush1.bf16.msra.mxu0 %v169
    %191 = vmatprep.subr.bf16.mxu0 0
    %192 = vmatpush1.bf16.msra.mxu0 %v170
    %193 = vmatprep.subr.bf16.mxu0 0
    %194 = vmatpush1.bf16.msra.mxu0 %v171
    %195 = vmatprep.subr.bf16.mxu0 0
    %196 = vmatpush1.bf16.msra.mxu0 %v172
    %197 = vmatprep.subr.bf16.mxu0 0
    %198 = vmatpush1.bf16.msra.mxu0 0
    %199 = vmatprep.subr.bf16.mxu0 0
    %200 = vmatpush1.bf16.msra.mxu0 0
    %201 = vmatprep.subr.bf16.mxu0 0
    %202 = vmatpush1.bf16.msra.mxu0 0
    %203 = vmatprep.subr.bf16.mxu0 0
    %204 = vmatpush1.bf16.msra.mxu0 0
    %205 = vmatprep.subr.bf16.mxu0 0
    %206 = vmatpush1.bf16.msra.mxu0 0
    %207 = vmatprep.subr.bf16.mxu0 0
    %208 = vmatpush1.bf16.msra.mxu0 0
    %209 = vmatprep.subr.bf16.mxu0 0
    %210 = vmatpush1.bf16.msra.mxu0 0
    %211 = vmatprep.subr.bf16.mxu0 0
    %212 = vmatpush1.bf16.msra.mxu0 0
    %213 = vmatprep.mubr.bf16.mxu0 0
    %214 = vmatmul.mubr.bf16.gmra.mrb[0].mxu0 %v109
    %v215 = vpop.f32.mrb[0].mxu0
    %v216 = vadd.f32 %v131, %v215
    %v217 = vpop.f32.mrb[0].mxu0
    %v218 = vpop.f32.mrb[0].mxu0
    %v219 = vpop.f32.mrb[0].mxu0
    %220 = vdwg.mxu0
    %v221 = vmax.f32 %v216, 0.0
    %v222 = vpack.c.bf16 %v221, %v221
    %v223 = vld [vmem:[#allocation2 + $0x4] sm:$0xf]
    %v224 = vld [vmem:[#allocation2 + $0x14] sm:$0xf]
    %v225 = vld [vmem:[#allocation2 + $0x24] sm:$0xf]
    %v226 = vld [vmem:[#allocation2 + $0x34] sm:$0xf]
    %v227 = vld [vmem:[#allocation2 + $0x44] sm:$0xf]
    %v228 = vld [vmem:[#allocation2 + $0x54] sm:$0xf]
    %v229 = vld [vmem:[#allocation2 + $0x64] sm:$0xf]
    %v230 = vld [vmem:[#allocation2 + $0x74] sm:$0xf]
    %v231 = vld [vmem:[#allocation2 + $0x84] sm:$0xf]
    %v232 = vld [vmem:[#allocation2 + $0x94] sm:$0xf]
    %v233 = vld [vmem:[#allocation2 + $0xa4] sm:$0xf]
    %v234 = vld [vmem:[#allocation2 + $0xb4] sm:$0xf]
    %v235 = vld [vmem:[#allocation2 + $0xc4] sm:$0xf]
    %v236 = vld [vmem:[#allocation2 + $0xd4] sm:$0xf]
    %v237 = vld [vmem:[#allocation2 + $0xe4] sm:$0xf]
    %v238 = vld [vmem:[#allocation2 + $0xf4] sm:$0xf]
    %v239 = vld [vmem:[%s4 + $0x2] sm:$0x1]
    %v241 = vlaneseq
    %v242 = vshrl.u32 %v241, 7
    %v243 = vsub.s32 0, %v242
    %v244 = vrot.slane %v239, %v243
    %v262 = vunpack.c.l.b16 %v223
    %v263 = vunpack.c.l.b16 %v224
    %v264 = vunpack.c.l.b16 %v225
    %v265 = vunpack.c.l.b16 %v226
    %v266 = vunpack.c.l.b16 %v227
    %v267 = vunpack.c.l.b16 %v228
    %v268 = vunpack.c.l.b16 %v229
    %v269 = vunpack.c.l.b16 %v230
    %v270 = vunpack.c.l.b16 %v231
    %v271 = vunpack.c.l.b16 %v232
    %v272 = vunpack.c.l.b16 %v233
    %v273 = vunpack.c.l.b16 %v234
    %v274 = vunpack.c.l.b16 %v235
    %v275 = vunpack.c.l.b16 %v236
    %v276 = vunpack.c.l.b16 %v237
    %v277 = vunpack.c.l.b16 %v238
    %v278 = vpack.c.b16 %v263, %v262
    %v279 = vpack.c.b16 %v265, %v264
    %v280 = vpack.c.b16 %v267, %v266
    %v281 = vpack.c.b16 %v269, %v268
    %v282 = vpack.c.b16 %v271, %v270
    %v283 = vpack.c.b16 %v273, %v272
    %v284 = vpack.c.b16 %v275, %v274
    %v285 = vpack.c.b16 %v277, %v276
    %294 = vmatprep.subr.bf16.mxu0 0
    %295 = vmatpush1.bf16.msra.mxu0 %v278
    %296 = vmatprep.subr.bf16.mxu0 0
    %297 = vmatpush1.bf16.msra.mxu0 %v279
    %298 = vmatprep.subr.bf16.mxu0 0
    %299 = vmatpush1.bf16.msra.mxu0 %v280
    %300 = vmatprep.subr.bf16.mxu0 0
    %301 = vmatpush1.bf16.msra.mxu0 %v281
    %302 = vmatprep.subr.bf16.mxu0 0
    %303 = vmatpush1.bf16.msra.mxu0 %v282
    %304 = vmatprep.subr.bf16.mxu0 0
    %305 = vmatpush1.bf16.msra.mxu0 %v283
    %306 = vmatprep.subr.bf16.mxu0 0
    %307 = vmatpush1.bf16.msra.mxu0 %v284
    %308 = vmatprep.subr.bf16.mxu0 0
    %309 = vmatpush1.bf16.msra.mxu0 %v285
    %310 = vmatprep.subr.bf16.mxu0 0
    %311 = vmatpush1.bf16.msra.mxu0 0
    %312 = vmatprep.subr.bf16.mxu0 0
    %313 = vmatpush1.bf16.msra.mxu0 0
    %314 = vmatprep.subr.bf16.mxu0 0
    %315 = vmatpush1.bf16.msra.mxu0 0
    %316 = vmatprep.subr.bf16.mxu0 0
    %317 = vmatpush1.bf16.msra.mxu0 0
    %318 = vmatprep.subr.bf16.mxu0 0
    %319 = vmatpush1.bf16.msra.mxu0 0
    %320 = vmatprep.subr.bf16.mxu0 0
    %321 = vmatpush1.bf16.msra.mxu0 0
    %322 = vmatprep.subr.bf16.mxu0 0
    %323 = vmatpush1.bf16.msra.mxu0 0
    %324 = vmatprep.subr.bf16.mxu0 0
    %325 = vmatpush1.bf16.msra.mxu0 0
    %326 = vmatprep.mubr.bf16.mxu0 0
    %327 = vmatmul.mubr.bf16.gmra.mrb[0].mxu0 %v222
    %v328 = vpop.f32.mrb[0].mxu0
    %v329 = vadd.f32 %v244, %v328
    %v330 = vpop.f32.mrb[0].mxu0
    %v331 = vpop.f32.mrb[0].mxu0
    %v332 = vpop.f32.mrb[0].mxu0
    %333 = vdwg.mxu0
    %v334 = vpack.c.bf16 %v329, %v329
    %v335 = vld [vmem:[#allocation2 + $0x8] sm:$0xf]
    %v336 = vld [vmem:[#allocation2 + $0x18] sm:$0xf]
    %v337 = vld [vmem:[#allocation2 + $0x28] sm:$0xf]
    %v338 = vld [vmem:[#allocation2 + $0x38] sm:$0xf]
    %v339 = vld [vmem:[#allocation2 + $0x48] sm:$0xf]
    %v340 = vld [vmem:[#allocation2 + $0x58] sm:$0xf]
    %v341 = vld [vmem:[#allocation2 + $0x68] sm:$0xf]
    %v342 = vld [vmem:[#allocation2 + $0x78] sm:$0xf]
    %v343 = vld [vmem:[#allocation2 + $0x88] sm:$0xf]
    %v344 = vld [vmem:[#allocation2 + $0x98] sm:$0xf]
    %v345 = vld [vmem:[#allocation2 + $0xa8] sm:$0xf]
    %v346 = vld [vmem:[#allocation2 + $0xb8] sm:$0xf]
    %v347 = vld [vmem:[#allocation2 + $0xc8] sm:$0xf]
    %v348 = vld [vmem:[#allocation2 + $0xd8] sm:$0xf]
    %v349 = vld [vmem:[#allocation2 + $0xe8] sm:$0xf]
    %v350 = vld [vmem:[#allocation2 + $0xf8] sm:$0xf]
    %v351 = vld [vmem:[%s4 + $0x3] sm:$0x1]
    %v353 = vlaneseq
    %v354 = vshrl.u32 %v353, 7
    %v355 = vsub.s32 0, %v354
    %v356 = vrot.slane %v351, %v355
    %v374 = vunpack.c.l.b16 %v335
    %v375 = vunpack.c.l.b16 %v336
    %v376 = vunpack.c.l.b16 %v337
    %v377 = vunpack.c.l.b16 %v338
    %v378 = vunpack.c.l.b16 %v339
    %v379 = vunpack.c.l.b16 %v340
    %v380 = vunpack.c.l.b16 %v341
    %v381 = vunpack.c.l.b16 %v342
    %v382 = vunpack.c.l.b16 %v343
    %v383 = vunpack.c.l.b16 %v344
    %v384 = vunpack.c.l.b16 %v345
    %v385 = vunpack.c.l.b16 %v346
    %v386 = vunpack.c.l.b16 %v347
    %v387 = vunpack.c.l.b16 %v348
    %v388 = vunpack.c.l.b16 %v349
    %v389 = vunpack.c.l.b16 %v350
    %v390 = vpack.c.b16 %v375, %v374
    %v391 = vpack.c.b16 %v377, %v376
    %v392 = vpack.c.b16 %v379, %v378
    %v393 = vpack.c.b16 %v381, %v380
    %v394 = vpack.c.b16 %v383, %v382
    %v395 = vpack.c.b16 %v385, %v384
    %v396 = vpack.c.b16 %v387, %v386
    %v397 = vpack.c.b16 %v389, %v388
    %406 = vmatprep.subr.bf16.mxu0 0
    %407 = vmatpush1.bf16.msra.mxu0 %v390
    %408 = vmatprep.subr.bf16.mxu0 0
    %409 = vmatpush1.bf16.msra.mxu0 %v391
    %410 = vmatprep.subr.bf16.mxu0 0
    %411 = vmatpush1.bf16.msra.mxu0 %v392
    %412 = vmatprep.subr.bf16.mxu0 0
    %413 = vmatpush1.bf16.msra.mxu0 %v393
    %414 = vmatprep.subr.bf16.mxu0 0
    %415 = vmatpush1.bf16.msra.mxu0 %v394
    %416 = vmatprep.subr.bf16.mxu0 0
    %417 = vmatpush1.bf16.msra.mxu0 %v395
    %418 = vmatprep.subr.bf16.mxu0 0
    %419 = vmatpush1.bf16.msra.mxu0 %v396
    %420 = vmatprep.subr.bf16.mxu0 0
    %421 = vmatpush1.bf16.msra.mxu0 %v397
    %422 = vmatprep.subr.bf16.mxu0 0
    %423 = vmatpush1.bf16.msra.mxu0 0
    %424 = vmatprep.subr.bf16.mxu0 0
    %425 = vmatpush1.bf16.msra.mxu0 0
    %426 = vmatprep.subr.bf16.mxu0 0
    %427 = vmatpush1.bf16.msra.mxu0 0
    %428 = vmatprep.subr.bf16.mxu0 0
    %429 = vmatpush1.bf16.msra.mxu0 0
    %430 = vmatprep.subr.bf16.mxu0 0
    %431 = vmatpush1.bf16.msra.mxu0 0
    %432 = vmatprep.subr.bf16.mxu0 0
    %433 = vmatpush1.bf16.msra.mxu0 0
    %434 = vmatprep.subr.bf16.mxu0 0
    %435 = vmatpush1.bf16.msra.mxu0 0
    %436 = vmatprep.subr.bf16.mxu0 0
    %437 = vmatpush1.bf16.msra.mxu0 0
    %438 = vmatprep.mubr.bf16.mxu0 0
    %439 = vmatmul.mubr.bf16.gmra.mrb[0].mxu0 %v334
    %v440 = vpop.f32.mrb[0].mxu0
    %v441 = vadd.f32 %v356, %v440
    %v442 = vpop.f32.mrb[0].mxu0
    %v443 = vpop.f32.mrb[0].mxu0
    %v444 = vpop.f32.mrb[0].mxu0
    %445 = vdwg.mxu0
    %v446 = vmax.f32 %v441, 0.0
    %v447 = vpack.c.bf16 %v446, %v446
    %v448 = vld [vmem:[#allocation2 + $0xc] sm:$0xf]
    %v449 = vld [vmem:[#allocation2 + $0x1c] sm:$0xf]
    %v450 = vld [vmem:[#allocation2 + $0x2c] sm:$0xf]
    %v451 = vld [vmem:[#allocation2 + $0x3c] sm:$0xf]
    %v452 = vld [vmem:[#allocation2 + $0x4c] sm:$0xf]
    %v453 = vld [vmem:[#allocation2 + $0x5c] sm:$0xf]
    %v454 = vld [vmem:[#allocation2 + $0x6c] sm:$0xf]
    %v455 = vld [vmem:[#allocation2 + $0x7c] sm:$0xf]
    %v456 = vld [vmem:[#allocation2 + $0x8c] sm:$0xf]
    %v457 = vld [vmem:[#allocation2 + $0x9c] sm:$0xf]
    %v458 = vld [vmem:[#allocation2 + $0xac] sm:$0xf]
    %v459 = vld [vmem:[#allocation2 + $0xbc] sm:$0xf]
    %v460 = vld [vmem:[#allocation2 + $0xcc] sm:$0xf]
    %v461 = vld [vmem:[#allocation2 + $0xdc] sm:$0xf]
    %v462 = vld [vmem:[#allocation2 + $0xec] sm:$0xf]
    %v463 = vld [vmem:[#allocation2 + $0xfc] sm:$0xf]
    %v464 = vld [vmem:[%s4 + $0x4] sm:$0x1]
    %v466 = vlaneseq
    %v467 = vshrl.u32 %v466, 7
    %v468 = vsub.s32 0, %v467
    %v469 = vrot.slane %v464, %v468
    %v487 = vunpack.c.l.b16 %v448
    %v488 = vunpack.c.l.b16 %v449
    %v489 = vunpack.c.l.b16 %v450
    %v490 = vunpack.c.l.b16 %v451
    %v491 = vunpack.c.l.b16 %v452
    %v492 = vunpack.c.l.b16 %v453
    %v493 = vunpack.c.l.b16 %v454
    %v494 = vunpack.c.l.b16 %v455
    %v495 = vunpack.c.l.b16 %v456
    %v496 = vunpack.c.l.b16 %v457
    %v497 = vunpack.c.l.b16 %v458
    %v498 = vunpack.c.l.b16 %v459
    %v499 = vunpack.c.l.b16 %v460
    %v500 = vunpack.c.l.b16 %v461
    %v501 = vunpack.c.l.b16 %v462
    %v502 = vunpack.c.l.b16 %v463
    %v503 = vpack.c.b16 %v488, %v487
    %v504 = vpack.c.b16 %v490, %v489
    %v505 = vpack.c.b16 %v492, %v491
    %v506 = vpack.c.b16 %v494, %v493
    %v507 = vpack.c.b16 %v496, %v495
    %v508 = vpack.c.b16 %v498, %v497
    %v509 = vpack.c.b16 %v500, %v499
    %v510 = vpack.c.b16 %v502, %v501
    %519 = vmatprep.subr.bf16.mxu0 0
    %520 = vmatpush1.bf16.msra.mxu0 %v503
    %521 = vmatprep.subr.bf16.mxu0 0
    %522 = vmatpush1.bf16.msra.mxu0 %v504
    %523 = vmatprep.subr.bf16.mxu0 0
    %524 = vmatpush1.bf16.msra.mxu0 %v505
    %525 = vmatprep.subr.bf16.mxu0 0
    %526 = vmatpush1.bf16.msra.mxu0 %v506
    %527 = vmatprep.subr.bf16.mxu0 0
    %528 = vmatpush1.bf16.msra.mxu0 %v507
    %529 = vmatprep.subr.bf16.mxu0 0
    %530 = vmatpush1.bf16.msra.mxu0 %v508
    %531 = vmatprep.subr.bf16.mxu0 0
    %532 = vmatpush1.bf16.msra.mxu0 %v509
    %533 = vmatprep.subr.bf16.mxu0 0
    %534 = vmatpush1.bf16.msra.mxu0 %v510
    %535 = vmatprep.subr.bf16.mxu0 0
    %536 = vmatpush1.bf16.msra.mxu0 0
    %537 = vmatprep.subr.bf16.mxu0 0
    %538 = vmatpush1.bf16.msra.mxu0 0
    %539 = vmatprep.subr.bf16.mxu0 0
    %540 = vmatpush1.bf16.msra.mxu0 0
    %541 = vmatprep.subr.bf16.mxu0 0
    %542 = vmatpush1.bf16.msra.mxu0 0
    %543 = vmatprep.subr.bf16.mxu0 0
    %544 = vmatpush1.bf16.msra.mxu0 0
    %545 = vmatprep.subr.bf16.mxu0 0
    %546 = vmatpush1.bf16.msra.mxu0 0
    %547 = vmatprep.subr.bf16.mxu0 0
    %548 = vmatpush1.bf16.msra.mxu0 0
    %549 = vmatprep.subr.bf16.mxu0 0
    %550 = vmatpush1.bf16.msra.mxu0 0
    %551 = vmatprep.mubr.bf16.mxu0 0
    %552 = vmatmul.mubr.bf16.gmra.mrb[0].mxu0 %v447
    %v553 = vpop.f32.mrb[0].mxu0
    %v554 = vadd.f32 %v469, %v553
    %v555 = vpop.f32.mrb[0].mxu0
    %v556 = vpop.f32.mrb[0].mxu0
    %v557 = vpop.f32.mrb[0].mxu0
    %558 = vdwg.mxu0
    %v559 = vmax.f32 %v554, 0.0
    %v560 = vpack.c.bf16 %v559, %v559
    %v561 = vld [vmem:[%s3] sm:$0xf]
    %v562 = vld [vmem:[%s3 + $0x4] sm:$0xf]
    %v563 = vld [vmem:[%s3 + $0x8] sm:$0xf]
    %v564 = vld [vmem:[%s3 + $0xc] sm:$0xf]
    %v565 = vld [vmem:[%s3 + $0x10] sm:$0xf]
    %v566 = vld [vmem:[%s3 + $0x14] sm:$0xf]
    %v567 = vld [vmem:[%s3 + $0x18] sm:$0xf]
    %v568 = vld [vmem:[%s3 + $0x1c] sm:$0xf]
    %v569 = vld [vmem:[%s3 + $0x20] sm:$0xf]
    %v570 = vld [vmem:[%s3 + $0x24] sm:$0xf]
    %v571 = vld [vmem:[%s3 + $0x28] sm:$0xf]
    %v572 = vld [vmem:[%s3 + $0x2c] sm:$0xf]
    %v573 = vld [vmem:[%s3 + $0x30] sm:$0xf]
    %v574 = vld [vmem:[%s3 + $0x34] sm:$0xf]
    %v575 = vld [vmem:[%s3 + $0x38] sm:$0xf]
    %v576 = vld [vmem:[%s3 + $0x3c] sm:$0xf]
    %v577 = vld [vmem:[%s5] sm:$0x1]
    %v579 = vlaneseq
    %v580 = vshrl.u32 %v579, 7
    %v581 = vsub.s32 0, %v580
    %v582 = vrot.slane %v577, %v581
    %v600 = vunpack.c.l.b16 %v561
    %v601 = vunpack.c.l.b16 %v562
    %v602 = vunpack.c.l.b16 %v563
    %v603 = vunpack.c.l.b16 %v564
    %v604 = vunpack.c.l.b16 %v565
    %v605 = vunpack.c.l.b16 %v566
    %v606 = vunpack.c.l.b16 %v567
    %v607 = vunpack.c.l.b16 %v568
    %v608 = vunpack.c.l.b16 %v569
    %v609 = vunpack.c.l.b16 %v570
    %v610 = vunpack.c.l.b16 %v571
    %v611 = vunpack.c.l.b16 %v572
    %v612 = vunpack.c.l.b16 %v573
    %v613 = vunpack.c.l.b16 %v574
    %v614 = vunpack.c.l.b16 %v575
    %v615 = vunpack.c.l.b16 %v576
    %v616 = vpack.c.b16 %v601, %v600
    %v617 = vpack.c.b16 %v603, %v602
    %v618 = vpack.c.b16 %v605, %v604
    %v619 = vpack.c.b16 %v607, %v606
    %v620 = vpack.c.b16 %v609, %v608
    %v621 = vpack.c.b16 %v611, %v610
    %v622 = vpack.c.b16 %v613, %v612
    %v623 = vpack.c.b16 %v615, %v614
    %632 = vmatprep.subr.bf16.mxu0 0
    %633 = vmatpush1.bf16.msra.mxu0 %v616
    %634 = vmatprep.subr.bf16.mxu0 0
    %635 = vmatpush1.bf16.msra.mxu0 %v617
    %636 = vmatprep.subr.bf16.mxu0 0
    %637 = vmatpush1.bf16.msra.mxu0 %v618
    %638 = vmatprep.subr.bf16.mxu0 0
    %639 = vmatpush1.bf16.msra.mxu0 %v619
    %640 = vmatprep.subr.bf16.mxu0 0
    %641 = vmatpush1.bf16.msra.mxu0 %v620
    %642 = vmatprep.subr.bf16.mxu0 0
    %643 = vmatpush1.bf16.msra.mxu0 %v621
    %644 = vmatprep.subr.bf16.mxu0 0
    %645 = vmatpush1.bf16.msra.mxu0 %v622
    %646 = vmatprep.subr.bf16.mxu0 0
    %647 = vmatpush1.bf16.msra.mxu0 %v623
    %648 = vmatprep.subr.bf16.mxu0 0
    %649 = vmatpush1.bf16.msra.mxu0 0
    %650 = vmatprep.subr.bf16.mxu0 0
    %651 = vmatpush1.bf16.msra.mxu0 0
    %652 = vmatprep.subr.bf16.mxu0 0
    %653 = vmatpush1.bf16.msra.mxu0 0
    %654 = vmatprep.subr.bf16.mxu0 0
    %655 = vmatpush1.bf16.msra.mxu0 0
    %656 = vmatprep.subr.bf16.mxu0 0
    %657 = vmatpush1.bf16.msra.mxu0 0
    %658 = vmatprep.subr.bf16.mxu0 0
    %659 = vmatpush1.bf16.msra.mxu0 0
    %660 = vmatprep.subr.bf16.mxu0 0
    %661 = vmatpush1.bf16.msra.mxu0 0
    %662 = vmatprep.subr.bf16.mxu0 0
    %663 = vmatpush1.bf16.msra.mxu0 0
    %664 = vmatprep.mubr.bf16.mxu0 0
    %665 = vmatmul.mubr.bf16.gmra.mrb[0].mxu0 %v560
    %v666 = vpop.f32.mrb[0].mxu0
    %v667 = vadd.f32 %v582, %v666
    %v668 = vpop.f32.mrb[0].mxu0
    %v669 = vpop.f32.mrb[0].mxu0
    %v670 = vpop.f32.mrb[0].mxu0
    %671 = vdwg.mxu0
    %672 = vst.msk [vmem:[#allocation5] sm:$0xff] %vm64, %v667
    // Predicated region
    $region30: #{tpu_custom_call.1} parent=1 // pred_check
      _
    $region31: #{tpu_custom_call.1} parent=1 // pred_check_branch
      %674 = sbr.rel (0) target = $region33
    $region32: #{tpu_custom_call.1} parent=1 // pred_region
      %s676 = ssub.s32 128, 128
      %677 = vsyncadd [#allocation4], %s676
      %s679 = sshll.u32 [#allocation5], 4
      %s680 = int_to_ptr.vmem [resolvable:$true] %s679
      %682 = dma.vmem_to_hbm [thread:$0]  %s680, 128, %s6, [#allocation4]
    $region33: #{tpu_custom_call.1} parent=1 // pred_fallthru
      _
    // Predicated region
    $region34: #{tpu_custom_call.1} parent=1 // pred_check
      _
    $region35: #{tpu_custom_call.1} parent=1 // pred_check_branch
      %684 = sbr.rel (0) target = $region37
    $region36: #{tpu_custom_call.1} parent=1 // pred_region
      %685 = dma.done [#allocation4], 128
    $region37: #{tpu_custom_call.1} parent=1 // pred_fallthru
      _
    %686 = vsyncpa [#allocation3], 1
    %687 = vsyncpa [#allocation4], 1

</llo_original>
